<compile_context>
chip_gen: v5e
topology: v5e:2x2
jax: 0.10.0
libtpu: 0.0.40
codegen_flags: <defaults>
</compile_context>

<pallas_src>
import functools

import jax
import jax.numpy as jnp
import numpy as np
from jax.experimental import pallas as pl
from jax.experimental.pallas import tpu as pltpu


# bf16 MXU operands for the two big attention matmuls (QK^T and PV).  Kept OFF by
# default because bf16 operands do not meet the 1e-4 atol/rtol check vs. the f32
# reference; softmax statistics and all accumulations stay f32 either way.
USE_BF16_MXU_OPERANDS = False


# ----------------------------- Pallas kernel ------------------------------- #
def _mha_kernel(q_ref, k_ref, v_ref,
                w_qkv_ref, b_qkv_ref, wm_ref, bm_ref,
                o_ref, x_ref, *, num_heads, kv_block, use_bf16):
    D, N = q_ref.shape                      # d_model, sequence length (channels-first)
    head_dim = D // num_heads
    n_kv = N // kv_block                    # wrapper guarantees kv_block | N
    mxu_dt = jnp.bfloat16 if use_bf16 else jnp.float32

    # Channels-first 1x1-conv projections: one (D, D) @ (D, N) matmul each.
    # The 1/sqrt(head_dim) scale is already folded into w_qkv[0] / b_qkv[0].
    Q = jnp.dot(w_qkv_ref[0], q_ref[...], preferred_element_type=jnp.float32) + b_qkv_ref[0]
    K = jnp.dot(w_qkv_ref[1], k_ref[...], preferred_element_type=jnp.float32) + b_qkv_ref[1]
    V = jnp.dot(w_qkv_ref[2], v_ref[...], preferred_element_type=jnp.float32) + b_qkv_ref[2]

    # Static loop over heads (num_heads is small).  Each head's temporaries die at the
    # x_ref store, so live ranges stay bounded even though the loop is unrolled.
    for h in range(num_heads):
        lo = h * head_dim
        q_h = Q[lo:lo + head_dim, :].astype(mxu_dt)        # (hd, N)  sublane-row slice
        k_ht = K[lo:lo + head_dim, :].T.astype(mxu_dt)     # (N, hd)  one small transpose / head
        v_h = V[lo:lo + head_dim, :].astype(mxu_dt)        # (hd, N)

        m_run = l_run = acc = None
        for j in range(n_kv):                              # flash-style KV chunks
            c0 = j * kv_block
            # Keys-major score orientation: stats are (1, N_q) rows which broadcast
            # over sublanes of the channels-first (hd, N_q) accumulator -> no extra
            # transposes and a lane-dense output.
            s = jnp.dot(k_ht[c0:c0 + kv_block, :], q_h,
                        preferred_element_type=jnp.float32)          # (kv_block, N_q)
            m_blk = jnp.max(s, axis=0, keepdims=True)                 # (1, N_q)
            if j == 0:
                m_run = m_blk
                p = jnp.exp(s - m_run)
                l_run = jnp.sum(p, axis=0, keepdims=True)
                acc = jnp.dot(v_h[:, c0:c0 + kv_block], p.astype(mxu_dt),
                              preferred_element_type=jnp.float32)     # (hd, N_q)
            else:
                m_new = jnp.maximum(m_run, m_blk)
                alpha = jnp.exp(m_run - m_new)                        # online rescale
                p = jnp.exp(s - m_new)
                l_run = alpha * l_run + jnp.sum(p, axis=0, keepdims=True)
                acc = alpha * acc + jnp.dot(v_h[:, c0:c0 + kv_block], p.astype(mxu_dt),
                                            preferred_element_type=jnp.float32)
                m_run = m_new

        # Normalize AFTER PV (O(hd*N) multiplies) and store: aligned sublane-row write
        # (head_dim is a multiple of 8 at SuperGlue sizes -> unmasked vst).
        x_ref[lo:lo + head_dim, :] = acc * pl.reciprocal(l_run)

    # Merge 1x1 conv: single full-depth (D, D) @ (D, N) MXU matmul, lane-dense output.
    out = jnp.dot(wm_ref[...], x_ref[...], preferred_element_type=jnp.float32) + bm_ref[...]
    o_ref[...] = out.astype(o_ref.dtype)


# ------------------------- one-time parameter packing ----------------------- #
def pack_params(params, num_heads):
    """Permute / stack the Conv1d weights once (hoisted out of the forward path)."""
    D = params["Wq"].shape[0]
    assert D % num_heads == 0
    head_dim = D // num_heads
    # New row j = h*head_dim + d  <->  PyTorch channel c = d*num_heads + h
    perm = np.asarray([d * num_heads + h for h in range(num_heads) for d in range(head_dim)],
                      dtype=np.int32)
    scale = 1.0 / np.sqrt(head_dim)

    wq = (params["Wq"][perm, :] * scale).astype(jnp.float32)     # scale folded into Wq/bq
    bq = (params["bq"][perm] * scale).astype(jnp.float32)
    wk = params["Wk"][perm, :].astype(jnp.float32)
    bk = params["bk"][perm].astype(jnp.float32)
    wv = params["Wv"][perm, :].astype(jnp.float32)
    bv = params["bv"][perm].astype(jnp.float32)

    return {
        "w_qkv": jnp.stack([wq, wk, wv], axis=0),                 # (3, D, D) -> one DMA
        "b_qkv": jnp.stack([bq, bk, bv], axis=0).reshape(3, D, 1),
        "wm": params["Wm"][:, perm].astype(jnp.float32),          # (D, D), input channels permuted
        "bm": params["bm"].reshape(D, 1).astype(jnp.float32),
        "num_heads": num_heads,
    }


# ------------------------------ Wrapper ------------------------------------ #
def _kv_block(n):
    """KV chunk size for the online-softmax loop (lane-aligned, divides N)."""
    if n <= 512:
        return n
    for c in (512, 256, 128):
        if n % c == 0:
            return c
    return n  # odd N: fall back to a single un-chunked pass


def _vmem_limit_bytes():
    """Generation-aware scoped-VMEM limit (~48 MiB on v7x, ~96 MiB on v5e/v6e)."""
    try:
        cap = int(getattr(pltpu.get_tpu_info(), "vmem_capacity_bytes", 64 * 1024 * 1024))
    except Exception:
        cap = 64 * 1024 * 1024            # conservative (v7x-sized) fallback
    return max(32 * 1024 * 1024, min(cap * 3 // 4, 96 * 1024 * 1024))


def multi_headed_attention_pallas(query, key, value, packed, *,
                                  use_bf16=USE_BF16_MXU_OPERANDS):
    """query/key/value: (B, d_model, N) float32 in the native PyTorch NCW layout."""
    B, D, N = query.shape
    num_heads = packed["num_heads"]
    kv_block = _kv_block(N)

    seq_spec = pl.BlockSpec((None, D, N), lambda b: (b, 0, 0))    # one batch / grid step
    const3 = lambda b: (0, 0, 0)
    const2 = lambda b: (0, 0)
    # TODO(synk): constant-index weight blocks are still double-buffered by the default
    # pipeliner (~2x their footprint); pl.Buffered(1) / a one-shot manual DMA would
    # reclaim that VMEM headroom once it is worth the extra plumbing.
    in_specs = [seq_spec, seq_spec, seq_spec,
                pl.BlockSpec((3, D, D), const3),
                pl.BlockSpec((3, D, 1), const3),
                pl.BlockSpec((D, D), const2),
                pl.BlockSpec((D, 1), const2)]

    kernel = functools.partial(_mha_kernel, num_heads=num_heads,
                               kv_block=kv_block, use_bf16=use_bf16)
    return pl.pallas_call(
        kernel,
        out_shape=jax.ShapeDtypeStruct((B, D, N), jnp.float32),
        grid=(B,),
        in_specs=in_specs,
        out_specs=seq_spec,
        scratch_shapes=[pltpu.VMEM((D, N), jnp.float32)],         # head-stacked X slab
        compiler_params=pltpu.CompilerParams(
            dimension_semantics=("parallel",),                    # batch is independent
            vmem_limit_bytes=_vmem_limit_bytes()),
    )(query.astype(jnp.float32), key.astype(jnp.float32), value.astype(jnp.float32),
      packed["w_qkv"], packed["b_qkv"], packed["wm"], packed["bm"])


# -------------------------- Pure-JAX reference ------------------------------ #
def multi_headed_attention_ref(query, key, value, params, num_heads):
    B, D, N = query.shape
    head_dim = D // num_heads

    def conv1x1(x, W, b):   # x: (B, D_in, N)
        return jnp.einsum('oi,bin->bon', W, x) + b[None, :, None]

    q = conv1x1(query, params["Wq"], params["bq"]).reshape(B, head_dim, num_heads, N)
    k = conv1x1(key,   params["Wk"], params["bk"]).reshape(B, head_dim, num_heads, N)
    v = conv1x1(value, params["Wv"], params["bv"]).reshape(B, head_dim, num_heads, N)

    scores = jnp.einsum('bdhn,bdhm->bhnm', q, k) / (head_dim ** 0.5)
    prob = jax.nn.softmax(scores, axis=-1)
    x = jnp.einsum('bhnm,bdhm->bdhn', prob, v)
    return conv1x1(x.reshape(B, D, N), params["Wm"], params["bm"])


# --------------------------------- Main ------------------------------------- #
if __name__ == "__main__":
    def make_case(B, d_model, num_heads, N):
        keys = jax.random.split(jax.random.PRNGKey(0), 11)
        bound = 1.0 / np.sqrt(d_model)      # PyTorch Conv1d default-ish uniform init

        def init_w(k):
            return jax.random.uniform(k, (d_model, d_model), jnp.float32, -bound, bound)

        def init_b(k):
            return jax.random.uniform(k, (d_model,), jnp.float32, -bound, bound)

        params = {
            "Wq": init_w(keys[0]), "bq": init_b(keys[1]),
            "Wk": init_w(keys[2]), "bk": init_b(keys[3]),
            "Wv": init_w(keys[4]), "bv": init_b(keys[5]),
            "Wm": init_w(keys[6]), "bm": init_b(keys[7]),
        }
        q = jax.random.normal(keys[8], (B, d_model, N), jnp.float32)
        k = jax.random.normal(keys[9], (B, d_model, N), jnp.float32)
        v = jax.random.normal(keys[10], (B, d_model, N), jnp.float32)
        return params, q, k, v

    # Primary small case consistent with the module: B=2, d_model=32, heads=4, N=16.
    params, q, k, v = make_case(2, 32, 4, 16)
    packed = pack_params(params, num_heads=4)
    out = jax.block_until_ready(multi_headed_attention_pallas(q, k, v, packed))
    ref = multi_headed_attention_ref(q, k, v, params, num_heads=4)
    np.testing.assert_allclose(np.asarray(out), np.asarray(ref), atol=1e-4, rtol=1e-4)

    # Larger-N case: exercises the flash-style KV-chunked online-softmax path
    # (2 chunks of 512) and the multi-step "parallel" batch grid.
    params2, q2, k2, v2 = make_case(2, 32, 4, 1024)
    packed2 = pack_params(params2, num_heads=4)
    out2 = jax.block_until_ready(multi_headed_attention_pallas(q2, k2, v2, packed2))
    ref2 = multi_headed_attention_ref(q2, k2, v2, params2, num_heads=4)
    np.testing.assert_allclose(np.asarray(out2), np.asarray(ref2), atol=1e-4, rtol=1e-4)

    print("KERNEL_OK")
</pallas_src>

<mosaic_0001>
module attributes {stable_mosaic.version = 11 : i64} {
  func.func @_mha_kernel(%arg0: i32, %arg1: memref<1x32x16xf32, #tpu.memory_space<vmem>>, %arg2: memref<1x32x16xf32, #tpu.memory_space<vmem>>, %arg3: memref<1x32x16xf32, #tpu.memory_space<vmem>>, %arg4: memref<3x32x32xf32, #tpu.memory_space<vmem>>, %arg5: memref<3x32x1xf32, #tpu.memory_space<vmem>>, %arg6: memref<32x32xf32, #tpu.memory_space<vmem>>, %arg7: memref<32x1xf32, #tpu.memory_space<vmem>>, %arg8: memref<1x32x16xf32, #tpu.memory_space<vmem>>, %arg9: memref<32x16xf32, #tpu.memory_space<vmem>>) attributes {dimension_semantics = [#tpu.dimension_semantics<parallel>], iteration_bounds = array<i64: 2>, scalar_prefetch = 0 : i64, scratch_operands = 1 : i64, tpu.core_type = #tpu.core_type<tc>, window_params = [{transform_indices = @transform_0, window_bounds = array<i64: 1, 32, 16>}, {transform_indices = @transform_1, window_bounds = array<i64: 1, 32, 16>}, {transform_indices = @transform_2, window_bounds = array<i64: 1, 32, 16>}, {pipeline_mode = #tpu.pipeline_mode<synchronous>, transform_indices = @transform_3, window_bounds = array<i64: 3, 32, 32>}, {pipeline_mode = #tpu.pipeline_mode<synchronous>, transform_indices = @transform_4, window_bounds = array<i64: 3, 32, 1>}, {pipeline_mode = #tpu.pipeline_mode<synchronous>, transform_indices = @transform_5, window_bounds = array<i64: 32, 32>}, {pipeline_mode = #tpu.pipeline_mode<synchronous>, transform_indices = @transform_6, window_bounds = array<i64: 32, 1>}, {transform_indices = @transform_7, window_bounds = array<i64: 1, 32, 16>}]} {
    %c0 = arith.constant 0 : index
    %c0_0 = arith.constant 0 : index
    %c0_1 = arith.constant 0 : index
    %0 = vector.load %arg4[%c0, %c0_0, %c0_1] : memref<3x32x32xf32, #tpu.memory_space<vmem>>, vector<1x32x32xf32>
    %1 = vector.shape_cast %0 : vector<1x32x32xf32> to vector<32x32xf32>
    %c0_2 = arith.constant 0 : index
    %c0_3 = arith.constant 0 : index
    %c0_4 = arith.constant 0 : index
    %2 = vector.load %arg1[%c0_2, %c0_3, %c0_4] : memref<1x32x16xf32, #tpu.memory_space<vmem>>, vector<1x32x16xf32>
    %3 = vector.shape_cast %2 : vector<1x32x16xf32> to vector<32x16xf32>
    %cst = arith.constant dense<0.000000e+00> : vector<32x16xf32>
    %4 = tpu.matmul %1, %3, %cst {dimension_numbers = #tpu.dot_dimension_numbers<[1], [0], [0], [1], [0, 0, 1, 1], [], []>} : vector<32x32xf32>, vector<32x16xf32>, vector<32x16xf32> -> vector<32x16xf32>
    %c0_5 = arith.constant 0 : index
    %c0_6 = arith.constant 0 : index
    %c0_7 = arith.constant 0 : index
    %5 = vector.load %arg5[%c0_5, %c0_6, %c0_7] : memref<3x32x1xf32, #tpu.memory_space<vmem>>, vector<1x32x1xf32>
    %6 = vector.shape_cast %5 : vector<1x32x1xf32> to vector<32x1xf32>
    %7 = vector.broadcast %6 : vector<32x1xf32> to vector<32x16xf32>
    %8 = arith.addf %4, %7 : vector<32x16xf32>
    %c1 = arith.constant 1 : index
    %c0_8 = arith.constant 0 : index
    %c0_9 = arith.constant 0 : index
    %9 = vector.load %arg4[%c1, %c0_8, %c0_9] : memref<3x32x32xf32, #tpu.memory_space<vmem>>, vector<1x32x32xf32>
    %10 = vector.shape_cast %9 : vector<1x32x32xf32> to vector<32x32xf32>
    %c0_10 = arith.constant 0 : index
    %c0_11 = arith.constant 0 : index
    %c0_12 = arith.constant 0 : index
    %11 = vector.load %arg2[%c0_10, %c0_11, %c0_12] : memref<1x32x16xf32, #tpu.memory_space<vmem>>, vector<1x32x16xf32>
    %12 = vector.shape_cast %11 : vector<1x32x16xf32> to vector<32x16xf32>
    %cst_13 = arith.constant dense<0.000000e+00> : vector<32x16xf32>
    %13 = tpu.matmul %10, %12, %cst_13 {dimension_numbers = #tpu.dot_dimension_numbers<[1], [0], [0], [1], [0, 0, 1, 1], [], []>} : vector<32x32xf32>, vector<32x16xf32>, vector<32x16xf32> -> vector<32x16xf32>
    %c1_14 = arith.constant 1 : index
    %c0_15 = arith.constant 0 : index
    %c0_16 = arith.constant 0 : index
    %14 = vector.load %arg5[%c1_14, %c0_15, %c0_16] : memref<3x32x1xf32, #tpu.memory_space<vmem>>, vector<1x32x1xf32>
    %15 = vector.shape_cast %14 : vector<1x32x1xf32> to vector<32x1xf32>
    %16 = vector.broadcast %15 : vector<32x1xf32> to vector<32x16xf32>
    %17 = arith.addf %13, %16 : vector<32x16xf32>
    %c2 = arith.constant 2 : index
    %c0_17 = arith.constant 0 : index
    %c0_18 = arith.constant 0 : index
    %18 = vector.load %arg4[%c2, %c0_17, %c0_18] : memref<3x32x32xf32, #tpu.memory_space<vmem>>, vector<1x32x32xf32>
    %19 = vector.shape_cast %18 : vector<1x32x32xf32> to vector<32x32xf32>
    %c0_19 = arith.constant 0 : index
    %c0_20 = arith.constant 0 : index
    %c0_21 = arith.constant 0 : index
    %20 = vector.load %arg3[%c0_19, %c0_20, %c0_21] : memref<1x32x16xf32, #tpu.memory_space<vmem>>, vector<1x32x16xf32>
    %21 = vector.shape_cast %20 : vector<1x32x16xf32> to vector<32x16xf32>
    %cst_22 = arith.constant dense<0.000000e+00> : vector<32x16xf32>
    %22 = tpu.matmul %19, %21, %cst_22 {dimension_numbers = #tpu.dot_dimension_numbers<[1], [0], [0], [1], [0, 0, 1, 1], [], []>} : vector<32x32xf32>, vector<32x16xf32>, vector<32x16xf32> -> vector<32x16xf32>
    %c2_23 = arith.constant 2 : index
    %c0_24 = arith.constant 0 : index
    %c0_25 = arith.constant 0 : index
    %23 = vector.load %arg5[%c2_23, %c0_24, %c0_25] : memref<3x32x1xf32, #tpu.memory_space<vmem>>, vector<1x32x1xf32>
    %24 = vector.shape_cast %23 : vector<1x32x1xf32> to vector<32x1xf32>
    %25 = vector.broadcast %24 : vector<32x1xf32> to vector<32x16xf32>
    %26 = arith.addf %22, %25 : vector<32x16xf32>
    %27 = vector.extract_strided_slice %8 {offsets = [0, 0], sizes = [8, 16], strides = [1, 1]} : vector<32x16xf32> to vector<8x16xf32>
    %28 = vector.extract_strided_slice %17 {offsets = [0, 0], sizes = [8, 16], strides = [1, 1]} : vector<32x16xf32> to vector<8x16xf32>
    %29 = tpu.transpose %28, [1, 0] : vector<8x16xf32> -> vector<16x8xf32>
    %30 = vector.extract_strided_slice %26 {offsets = [0, 0], sizes = [8, 16], strides = [1, 1]} : vector<32x16xf32> to vector<8x16xf32>
    %cst_26 = arith.constant dense<0.000000e+00> : vector<16x16xf32>
    %31 = tpu.matmul %29, %27, %cst_26 {dimension_numbers = #tpu.dot_dimension_numbers<[1], [0], [0], [1], [0, 0, 1, 1], [], []>} : vector<16x8xf32>, vector<8x16xf32>, vector<16x16xf32> -> vector<16x16xf32>
    %cst_27 = arith.constant dense<0xFF800000> : vector<16xf32>
    %32 = vector.multi_reduction <maximumf>, %31, %cst_27 [0] : vector<16x16xf32> to vector<16xf32>
    %33 = vector.shape_cast %32 : vector<16xf32> to vector<1x16xf32>
    %34 = vector.broadcast %33 : vector<1x16xf32> to vector<16x16xf32>
    %35 = arith.subf %31, %34 : vector<16x16xf32>
    %36 = math.exp %35 : vector<16x16xf32>
    %cst_28 = arith.constant dense<0.000000e+00> : vector<16xf32>
    %37 = vector.multi_reduction <add>, %36, %cst_28 [0] : vector<16x16xf32> to vector<16xf32>
    %38 = vector.shape_cast %37 : vector<16xf32> to vector<1x16xf32>
    %cst_29 = arith.constant dense<0.000000e+00> : vector<8x16xf32>
    %39 = tpu.matmul %30, %36, %cst_29 {dimension_numbers = #tpu.dot_dimension_numbers<[1], [0], [0], [1], [0, 0, 1, 1], [], []>} : vector<8x16xf32>, vector<16x16xf32>, vector<8x16xf32> -> vector<8x16xf32>
    %40 = tpu.reciprocal %38 : vector<1x16xf32> -> vector<1x16xf32>
    %41 = vector.broadcast %40 : vector<1x16xf32> to vector<8x16xf32>
    %42 = arith.mulf %39, %41 : vector<8x16xf32>
    %c0_30 = arith.constant 0 : index
    %c0_31 = arith.constant 0 : index
    %43 = vector.load %arg9[%c0_30, %c0_31] : memref<32x16xf32, #tpu.memory_space<vmem>>, vector<8x16xf32>
    tpu.vector_store %arg9[%c0_30, %c0_31], %42 {strides = array<i32>} : memref<32x16xf32, #tpu.memory_space<vmem>>, vector<8x16xf32>,
    %44 = vector.extract_strided_slice %8 {offsets = [8, 0], sizes = [8, 16], strides = [1, 1]} : vector<32x16xf32> to vector<8x16xf32>
    %45 = vector.extract_strided_slice %17 {offsets = [8, 0], sizes = [8, 16], strides = [1, 1]} : vector<32x16xf32> to vector<8x16xf32>
    %46 = tpu.transpose %45, [1, 0] : vector<8x16xf32> -> vector<16x8xf32>
    %47 = vector.extract_strided_slice %26 {offsets = [8, 0], sizes = [8, 16], strides = [1, 1]} : vector<32x16xf32> to vector<8x16xf32>
    %cst_32 = arith.constant dense<0.000000e+00> : vector<16x16xf32>
    %48 = tpu.matmul %46, %44, %cst_32 {dimension_numbers = #tpu.dot_dimension_numbers<[1], [0], [0], [1], [0, 0, 1, 1], [], []>} : vector<16x8xf32>, vector<8x16xf32>, vector<16x16xf32> -> vector<16x16xf32>
    %cst_33 = arith.constant dense<0xFF800000> : vector<16xf32>
    %49 = vector.multi_reduction <maximumf>, %48, %cst_33 [0] : vector<16x16xf32> to vector<16xf32>
    %50 = vector.shape_cast %49 : vector<16xf32> to vector<1x16xf32>
    %51 = vector.broadcast %50 : vector<1x16xf32> to vector<16x16xf32>
    %52 = arith.subf %48, %51 : vector<16x16xf32>
    %53 = math.exp %52 : vector<16x16xf32>
    %cst_34 = arith.constant dense<0.000000e+00> : vector<16xf32>
    %54 = vector.multi_reduction <add>, %53, %cst_34 [0] : vector<16x16xf32> to vector<16xf32>
    %55 = vector.shape_cast %54 : vector<16xf32> to vector<1x16xf32>
    %cst_35 = arith.constant dense<0.000000e+00> : vector<8x16xf32>
    %56 = tpu.matmul %47, %53, %cst_35 {dimension_numbers = #tpu.dot_dimension_numbers<[1], [0], [0], [1], [0, 0, 1, 1], [], []>} : vector<8x16xf32>, vector<16x16xf32>, vector<8x16xf32> -> vector<8x16xf32>
    %57 = tpu.reciprocal %55 : vector<1x16xf32> -> vector<1x16xf32>
    %58 = vector.broadcast %57 : vector<1x16xf32> to vector<8x16xf32>
    %59 = arith.mulf %56, %58 : vector<8x16xf32>
    %c8 = arith.constant 8 : index
    %c0_36 = arith.constant 0 : index
    %60 = vector.load %arg9[%c8, %c0_36] : memref<32x16xf32, #tpu.memory_space<vmem>>, vector<8x16xf32>
    tpu.vector_store %arg9[%c8, %c0_36], %59 {strides = array<i32>} : memref<32x16xf32, #tpu.memory_space<vmem>>, vector<8x16xf32>,
    %61 = vector.extract_strided_slice %8 {offsets = [16, 0], sizes = [8, 16], strides = [1, 1]} : vector<32x16xf32> to vector<8x16xf32>
    %62 = vector.extract_strided_slice %17 {offsets = [16, 0], sizes = [8, 16], strides = [1, 1]} : vector<32x16xf32> to vector<8x16xf32>
    %63 = tpu.transpose %62, [1, 0] : vector<8x16xf32> -> vector<16x8xf32>
    %64 = vector.extract_strided_slice %26 {offsets = [16, 0], sizes = [8, 16], strides = [1, 1]} : vector<32x16xf32> to vector<8x16xf32>
    %cst_37 = arith.constant dense<0.000000e+00> : vector<16x16xf32>
    %65 = tpu.matmul %63, %61, %cst_37 {dimension_numbers = #tpu.dot_dimension_numbers<[1], [0], [0], [1], [0, 0, 1, 1], [], []>} : vector<16x8xf32>, vector<8x16xf32>, vector<16x16xf32> -> vector<16x16xf32>
    %cst_38 = arith.constant dense<0xFF800000> : vector<16xf32>
    %66 = vector.multi_reduction <maximumf>, %65, %cst_38 [0] : vector<16x16xf32> to vector<16xf32>
    %67 = vector.shape_cast %66 : vector<16xf32> to vector<1x16xf32>
    %68 = vector.broadcast %67 : vector<1x16xf32> to vector<16x16xf32>
    %69 = arith.subf %65, %68 : vector<16x16xf32>
    %70 = math.exp %69 : vector<16x16xf32>
    %cst_39 = arith.constant dense<0.000000e+00> : vector<16xf32>
    %71 = vector.multi_reduction <add>, %70, %cst_39 [0] : vector<16x16xf32> to vector<16xf32>
    %72 = vector.shape_cast %71 : vector<16xf32> to vector<1x16xf32>
    %cst_40 = arith.constant dense<0.000000e+00> : vector<8x16xf32>
    %73 = tpu.matmul %64, %70, %cst_40 {dimension_numbers = #tpu.dot_dimension_numbers<[1], [0], [0], [1], [0, 0, 1, 1], [], []>} : vector<8x16xf32>, vector<16x16xf32>, vector<8x16xf32> -> vector<8x16xf32>
    %74 = tpu.reciprocal %72 : vector<1x16xf32> -> vector<1x16xf32>
    %75 = vector.broadcast %74 : vector<1x16xf32> to vector<8x16xf32>
    %76 = arith.mulf %73, %75 : vector<8x16xf32>
    %c16 = arith.constant 16 : index
    %c0_41 = arith.constant 0 : index
    %77 = vector.load %arg9[%c16, %c0_41] : memref<32x16xf32, #tpu.memory_space<vmem>>, vector<8x16xf32>
    tpu.vector_store %arg9[%c16, %c0_41], %76 {strides = array<i32>} : memref<32x16xf32, #tpu.memory_space<vmem>>, vector<8x16xf32>,
    %78 = vector.extract_strided_slice %8 {offsets = [24, 0], sizes = [8, 16], strides = [1, 1]} : vector<32x16xf32> to vector<8x16xf32>
    %79 = vector.extract_strided_slice %17 {offsets = [24, 0], sizes = [8, 16], strides = [1, 1]} : vector<32x16xf32> to vector<8x16xf32>
    %80 = tpu.transpose %79, [1, 0] : vector<8x16xf32> -> vector<16x8xf32>
    %81 = vector.extract_strided_slice %26 {offsets = [24, 0], sizes = [8, 16], strides = [1, 1]} : vector<32x16xf32> to vector<8x16xf32>
    %cst_42 = arith.constant dense<0.000000e+00> : vector<16x16xf32>
    %82 = tpu.matmul %80, %78, %cst_42 {dimension_numbers = #tpu.dot_dimension_numbers<[1], [0], [0], [1], [0, 0, 1, 1], [], []>} : vector<16x8xf32>, vector<8x16xf32>, vector<16x16xf32> -> vector<16x16xf32>
    %cst_43 = arith.constant dense<0xFF800000> : vector<16xf32>
    %83 = vector.multi_reduction <maximumf>, %82, %cst_43 [0] : vector<16x16xf32> to vector<16xf32>
    %84 = vector.shape_cast %83 : vector<16xf32> to vector<1x16xf32>
    %85 = vector.broadcast %84 : vector<1x16xf32> to vector<16x16xf32>
    %86 = arith.subf %82, %85 : vector<16x16xf32>
    %87 = math.exp %86 : vector<16x16xf32>
    %cst_44 = arith.constant dense<0.000000e+00> : vector<16xf32>
    %88 = vector.multi_reduction <add>, %87, %cst_44 [0] : vector<16x16xf32> to vector<16xf32>
    %89 = vector.shape_cast %88 : vector<16xf32> to vector<1x16xf32>
    %cst_45 = arith.constant dense<0.000000e+00> : vector<8x16xf32>
    %90 = tpu.matmul %81, %87, %cst_45 {dimension_numbers = #tpu.dot_dimension_numbers<[1], [0], [0], [1], [0, 0, 1, 1], [], []>} : vector<8x16xf32>, vector<16x16xf32>, vector<8x16xf32> -> vector<8x16xf32>
    %91 = tpu.reciprocal %89 : vector<1x16xf32> -> vector<1x16xf32>
    %92 = vector.broadcast %91 : vector<1x16xf32> to vector<8x16xf32>
    %93 = arith.mulf %90, %92 : vector<8x16xf32>
    %c24 = arith.constant 24 : index
    %c0_46 = arith.constant 0 : index
    %94 = vector.load %arg9[%c24, %c0_46] : memref<32x16xf32, #tpu.memory_space<vmem>>, vector<8x16xf32>
    tpu.vector_store %arg9[%c24, %c0_46], %93 {strides = array<i32>} : memref<32x16xf32, #tpu.memory_space<vmem>>, vector<8x16xf32>,
    %c0_47 = arith.constant 0 : index
    %c0_48 = arith.constant 0 : index
    %95 = vector.load %arg6[%c0_47, %c0_48] : memref<32x32xf32, #tpu.memory_space<vmem>>, vector<32x32xf32>
    %c0_49 = arith.constant 0 : index
    %c0_50 = arith.constant 0 : index
    %96 = vector.load %arg9[%c0_49, %c0_50] : memref<32x16xf32, #tpu.memory_space<vmem>>, vector<32x16xf32>
    %cst_51 = arith.constant dense<0.000000e+00> : vector<32x16xf32>
    %97 = tpu.matmul %95, %96, %cst_51 {dimension_numbers = #tpu.dot_dimension_numbers<[1], [0], [0], [1], [0, 0, 1, 1], [], []>} : vector<32x32xf32>, vector<32x16xf32>, vector<32x16xf32> -> vector<32x16xf32>
    %c0_52 = arith.constant 0 : index
    %c0_53 = arith.constant 0 : index
    %98 = vector.load %arg7[%c0_52, %c0_53] : memref<32x1xf32, #tpu.memory_space<vmem>>, vector<32x1xf32>
    %99 = vector.broadcast %98 : vector<32x1xf32> to vector<32x16xf32>
    %100 = arith.addf %97, %99 : vector<32x16xf32>
    %c0_54 = arith.constant 0 : index
    %c0_55 = arith.constant 0 : index
    %c0_56 = arith.constant 0 : index
    %101 = vector.load %arg8[%c0_54, %c0_55, %c0_56] : memref<1x32x16xf32, #tpu.memory_space<vmem>>, vector<1x32x16xf32>
    %102 = vector.shape_cast %101 : vector<1x32x16xf32> to vector<32x16xf32>
    %103 = vector.shape_cast %100 : vector<32x16xf32> to vector<1x32x16xf32>
    tpu.vector_store %arg8[%c0_54, %c0_55, %c0_56], %103 {strides = array<i32>} : memref<1x32x16xf32, #tpu.memory_space<vmem>>, vector<1x32x16xf32>,
    return
  }
  func.func @transform_0(%arg0: i32) -> (i32, i32, i32) {
    %c0_i32 = arith.constant 0 : i32
    %c0_i32_0 = arith.constant 0 : i32
    %c0_i32_1 = arith.constant 0 : i32
    return %arg0, %c0_i32, %c0_i32_0 : i32, i32, i32
  }
  func.func @transform_1(%arg0: i32) -> (i32, i32, i32) {
    %c0_i32 = arith.constant 0 : i32
    %c0_i32_0 = arith.constant 0 : i32
    %c0_i32_1 = arith.constant 0 : i32
    return %arg0, %c0_i32, %c0_i32_0 : i32, i32, i32
  }
  func.func @transform_2(%arg0: i32) -> (i32, i32, i32) {
    %c0_i32 = arith.constant 0 : i32
    %c0_i32_0 = arith.constant 0 : i32
    %c0_i32_1 = arith.constant 0 : i32
    return %arg0, %c0_i32, %c0_i32_0 : i32, i32, i32
  }
  func.func @transform_3(%arg0: i32) -> (i32, i32, i32) {
    %c0_i32 = arith.constant 0 : i32
    %c0_i32_0 = arith.constant 0 : i32
    %c0_i32_1 = arith.constant 0 : i32
    %c0_i32_2 = arith.constant 0 : i32
    return %c0_i32, %c0_i32_0, %c0_i32_1 : i32, i32, i32
  }
  func.func @transform_4(%arg0: i32) -> (i32, i32, i32) {
    %c0_i32 = arith.constant 0 : i32
    %c0_i32_0 = arith.constant 0 : i32
    %c0_i32_1 = arith.constant 0 : i32
    %c0_i32_2 = arith.constant 0 : i32
    return %c0_i32, %c0_i32_0, %c0_i32_1 : i32, i32, i32
  }
  func.func @transform_5(%arg0: i32) -> (i32, i32) {
    %c0_i32 = arith.constant 0 : i32
    %c0_i32_0 = arith.constant 0 : i32
    %c0_i32_1 = arith.constant 0 : i32
    return %c0_i32, %c0_i32_0 : i32, i32
  }
  func.func @transform_6(%arg0: i32) -> (i32, i32) {
    %c0_i32 = arith.constant 0 : i32
    %c0_i32_0 = arith.constant 0 : i32
    %c0_i32_1 = arith.constant 0 : i32
    return %c0_i32, %c0_i32_0 : i32, i32
  }
  func.func @transform_7(%arg0: i32) -> (i32, i32, i32) {
    %c0_i32 = arith.constant 0 : i32
    %c0_i32_0 = arith.constant 0 : i32
    %c0_i32_1 = arith.constant 0 : i32
    return %arg0, %c0_i32, %c0_i32_0 : i32, i32, i32
  }
}

</mosaic_0001>

<llo_original>
// kernel: tpu_custom_call.1
$region0: #{tpu_custom_call.1}
  #allocation0 [shape = 'u32[]', space=smem, size = 0x4, offset = 0x4, fixed_abs, tag = 'smem constant byte address 0x4 - core index']
  #allocation1 [shape = 'u32[72,128]{1,0:T(1,128)}', space=vmem, size = 0x9000, scoped, tag = 'internal scratch']
  #allocation2 [shape = 'f32[32,16]{1,0:T(8,128)}', space=vmem, size = 0x4000, scoped, tag = 'scratch operand']
  %s0 = inlined_call_operand.vmem [shape: f32[2,32,16], index: 0, kind: input, shape index: {}]
  %s1 = inlined_call_operand.vmem [shape: f32[2,32,16], index: 1, kind: input, shape index: {}]
  %s2 = inlined_call_operand.vmem [shape: f32[2,32,16], index: 2, kind: input, shape index: {}]
  %s3 = inlined_call_operand.vmem [shape: f32[3,32,32], index: 3, kind: input, shape index: {}]
  %s4 = inlined_call_operand.vmem [shape: f32[3,32,1], index: 4, kind: input, shape index: {}]
  %s5 = inlined_call_operand.vmem [shape: f32[32,32], index: 5, kind: input, shape index: {}]
  %s6 = inlined_call_operand.vmem [shape: f32[32,1], index: 6, kind: input, shape index: {}]
  %s7 = inlined_call_operand.vmem [shape: f32[2,32,16], index: 7, kind: output, shape index: {}]
  %s8 = sld [smem:[#allocation0]]
  $region61: #{tpu_custom_call.1} parent=0
    _
  %s10 = ssub.s32 1, %s8
  %s11 = scalar_select 0, %s10, %s8
  loop: start=0, step=1, limit=4
  $region2: #{tpu_custom_call.1} parent=0 // loop_pre_header
    _
  $region3: #{tpu_custom_call.1} parent=0 // loop_header
    %s13 = sphi 0, %s17
    %p14 = scmp.ge.s32.totalorder %s13, 4
    %s23 = sphi 0, %s25
    %s26 = sphi 0, %s23
    %s27 = sphi 0, %s26
    %s43 = sphi 0, %s27
    %s49 = sphi 0, %s51
    %s52 = sphi 0, %s49
    %s53 = sphi 0, %s52
    %s69 = sphi 0, %s53
    %s75 = sphi 0, %s77
    %s78 = sphi 0, %s75
    %s79 = sphi 0, %s78
    %s95 = sphi 0, %s79
    %s99 = sphi 0, %s99
    %s101 = sphi 0, %s99
    %s102 = sphi 0, %s101
    %s116 = sphi 0, %s102
    %s120 = sphi 0, %s120
    %s122 = sphi 0, %s120
    %s123 = sphi 0, %s122
    %s137 = sphi 0, %s123
    %s141 = sphi 0, %s141
    %s143 = sphi 0, %s141
    %s144 = sphi 0, %s143
    %s158 = sphi 0, %s144
    %s162 = sphi 0, %s162
    %s164 = sphi 0, %s162
    %s165 = sphi 0, %s164
    %s179 = sphi 0, %s165
    %s185 = sphi 0, %s187
    %s188 = sphi 0, %s185
    %s189 = sphi 0, %s188
    %s205 = sphi 0, %s189
  $region4: #{tpu_custom_call.1} parent=0 // loop_header_branch
    %16 = sbr.rel (%p14) target = $region8
  $region5: #{tpu_custom_call.1} parent=0 // loop_body
    %s18 = ssub.s32 %s13, 1
    %s19 = ssub.s32 %s13, 2
    %s20 = sadd.s32 %s13, 1
    %s21 = ssub.s32 %s13, %s20
    %p22 = scmp.eq.s32.totalorder %s21, 0
    %s24 = sadd.s32 %s23, 1
    %s25 = scalar_select %p22, %s23, %s24
    %p28 = pneg %p22
    %p29 = scmp.eq.s32.totalorder %s13, 1
    %p30 = por %p28, %p29
    %p31 = scmp.ne.s32.totalorder %s23, %s26
    %p32 = scmp.eq.s32.totalorder %s13, 0
    %p33 = por %p31, %p32
    %p34 = scmp.ne.s32.totalorder %s23, %s26
    %p35 = scmp.eq.s32.totalorder %s18, 1
    %p36 = por %p34, %p35
    %p37 = scmp.ne.s32.totalorder %s26, %s27
    %p38 = scmp.eq.s32.totalorder %s18, 0
    %p39 = por %p37, %p38
    %p40 = scmp.ne.s32.totalorder %s26, %s27
    %p41 = scmp.eq.s32.totalorder %s19, 1
    %p42 = por %p40, %p41
    %p44 = scmp.ne.s32.totalorder %s27, %s43
    %p45 = scmp.eq.s32.totalorder %s19, 0
    %p46 = por %p44, %p45
    %s47 = ssub.s32 %s13, %s20
    %p48 = scmp.eq.s32.totalorder %s47, 0
    %s50 = sadd.s32 %s49, 1
    %s51 = scalar_select %p48, %s49, %s50
    %p54 = pneg %p48
    %p55 = scmp.eq.s32.totalorder %s13, 1
    %p56 = por %p54, %p55
    %p57 = scmp.ne.s32.totalorder %s49, %s52
    %p58 = scmp.eq.s32.totalorder %s13, 0
    %p59 = por %p57, %p58
    %p60 = scmp.ne.s32.totalorder %s49, %s52
    %p61 = scmp.eq.s32.totalorder %s18, 1
    %p62 = por %p60, %p61
    %p63 = scmp.ne.s32.totalorder %s52, %s53
    %p64 = scmp.eq.s32.totalorder %s18, 0
    %p65 = por %p63, %p64
    %p66 = scmp.ne.s32.totalorder %s52, %s53
    %p67 = scmp.eq.s32.totalorder %s19, 1
    %p68 = por %p66, %p67
    %p70 = scmp.ne.s32.totalorder %s53, %s69
    %p71 = scmp.eq.s32.totalorder %s19, 0
    %p72 = por %p70, %p71
    %s73 = ssub.s32 %s13, %s20
    %p74 = scmp.eq.s32.totalorder %s73, 0
    %s76 = sadd.s32 %s75, 1
    %s77 = scalar_select %p74, %s75, %s76
    %p80 = pneg %p74
    %p81 = scmp.eq.s32.totalorder %s13, 1
    %p82 = por %p80, %p81
    %p83 = scmp.ne.s32.totalorder %s75, %s78
    %p84 = scmp.eq.s32.totalorder %s13, 0
    %p85 = por %p83, %p84
    %p86 = scmp.ne.s32.totalorder %s75, %s78
    %p87 = scmp.eq.s32.totalorder %s18, 1
    %p88 = por %p86, %p87
    %p89 = scmp.ne.s32.totalorder %s78, %s79
    %p90 = scmp.eq.s32.totalorder %s18, 0
    %p91 = por %p89, %p90
    %p92 = scmp.ne.s32.totalorder %s78, %s79
    %p93 = scmp.eq.s32.totalorder %s19, 1
    %p94 = por %p92, %p93
    %p96 = scmp.ne.s32.totalorder %s79, %s95
    %p97 = scmp.eq.s32.totalorder %s19, 0
    %p98 = por %p96, %p97
    %s100 = sadd.s32 %s99, 1
    %p103 = scmp.eq.s32.totalorder %s13, 1
    %p104 = scmp.ne.s32.totalorder %s99, %s101
    %p105 = scmp.eq.s32.totalorder %s13, 0
    %p106 = por %p104, %p105
    %p107 = scmp.ne.s32.totalorder %s99, %s101
    %p108 = scmp.eq.s32.totalorder %s18, 1
    %p109 = por %p107, %p108
    %p110 = scmp.ne.s32.totalorder %s101, %s102
    %p111 = scmp.eq.s32.totalorder %s18, 0
    %p112 = por %p110, %p111
    %p113 = scmp.ne.s32.totalorder %s101, %s102
    %p114 = scmp.eq.s32.totalorder %s19, 1
    %p115 = por %p113, %p114
    %p117 = scmp.ne.s32.totalorder %s102, %s116
    %p118 = scmp.eq.s32.totalorder %s19, 0
    %p119 = por %p117, %p118
    %s121 = sadd.s32 %s120, 1
    %p124 = scmp.eq.s32.totalorder %s13, 1
    %p125 = scmp.ne.s32.totalorder %s120, %s122
    %p126 = scmp.eq.s32.totalorder %s13, 0
    %p127 = por %p125, %p126
    %p128 = scmp.ne.s32.totalorder %s120, %s122
    %p129 = scmp.eq.s32.totalorder %s18, 1
    %p130 = por %p128, %p129
    %p131 = scmp.ne.s32.totalorder %s122, %s123
    %p132 = scmp.eq.s32.totalorder %s18, 0
    %p133 = por %p131, %p132
    %p134 = scmp.ne.s32.totalorder %s122, %s123
    %p135 = scmp.eq.s32.totalorder %s19, 1
    %p136 = por %p134, %p135
    %p138 = scmp.ne.s32.totalorder %s123, %s137
    %p139 = scmp.eq.s32.totalorder %s19, 0
    %p140 = por %p138, %p139
    %s142 = sadd.s32 %s141, 1
    %p145 = scmp.eq.s32.totalorder %s13, 1
    %p146 = scmp.ne.s32.totalorder %s141, %s143
    %p147 = scmp.eq.s32.totalorder %s13, 0
    %p148 = por %p146, %p147
    %p149 = scmp.ne.s32.totalorder %s141, %s143
    %p150 = scmp.eq.s32.totalorder %s18, 1
    %p151 = por %p149, %p150
    %p152 = scmp.ne.s32.totalorder %s143, %s144
    %p153 = scmp.eq.s32.totalorder %s18, 0
    %p154 = por %p152, %p153
    %p155 = scmp.ne.s32.totalorder %s143, %s144
    %p156 = scmp.eq.s32.totalorder %s19, 1
    %p157 = por %p155, %p156
    %p159 = scmp.ne.s32.totalorder %s144, %s158
    %p160 = scmp.eq.s32.totalorder %s19, 0
    %p161 = por %p159, %p160
    %s163 = sadd.s32 %s162, 1
    %p166 = scmp.eq.s32.totalorder %s13, 1
    %p167 = scmp.ne.s32.totalorder %s162, %s164
    %p168 = scmp.eq.s32.totalorder %s13, 0
    %p169 = por %p167, %p168
    %p170 = scmp.ne.s32.totalorder %s162, %s164
    %p171 = scmp.eq.s32.totalorder %s18, 1
    %p172 = por %p170, %p171
    %p173 = scmp.ne.s32.totalorder %s164, %s165
    %p174 = scmp.eq.s32.totalorder %s18, 0
    %p175 = por %p173, %p174
    %p176 = scmp.ne.s32.totalorder %s164, %s165
    %p177 = scmp.eq.s32.totalorder %s19, 1
    %p178 = por %p176, %p177
    %p180 = scmp.ne.s32.totalorder %s165, %s179
    %p181 = scmp.eq.s32.totalorder %s19, 0
    %p182 = por %p180, %p181
    %s183 = ssub.s32 %s13, %s20
    %p184 = scmp.eq.s32.totalorder %s183, 0
    %s186 = sadd.s32 %s185, 1
    %s187 = scalar_select %p184, %s185, %s186
    %p190 = pneg %p184
    %p191 = scmp.eq.s32.totalorder %s13, 1
    %p192 = por %p190, %p191
    %p193 = scmp.ne.s32.totalorder %s185, %s188
    %p194 = scmp.eq.s32.totalorder %s13, 0
    %p195 = por %p193, %p194
    %p196 = scmp.ne.s32.totalorder %s185, %s188
    %p197 = scmp.eq.s32.totalorder %s18, 1
    %p198 = por %p196, %p197
    %p199 = scmp.ne.s32.totalorder %s188, %s189
    %p200 = scmp.eq.s32.totalorder %s18, 0
    %p201 = por %p199, %p200
    %p202 = scmp.ne.s32.totalorder %s188, %s189
    %p203 = scmp.eq.s32.totalorder %s19, 1
    %p204 = por %p202, %p203
    %p206 = scmp.ne.s32.totalorder %s189, %s205
    %p207 = scmp.eq.s32.totalorder %s19, 0
    %p208 = por %p206, %p207
    %p209 = scmp.le.s32.totalorder 1, %s13
    %p210 = scmp.lt.s32.totalorder %s13, 3
    %p211 = pnand %p209, %p210
    %p212 = pneg %p211
    // Predicated region
    $region9: #{tpu_custom_call.1} parent=5 // pred_check
      _
    $region10: #{tpu_custom_call.1} parent=5 // pred_check_branch
      %214 = sbr.rel (%p211) target = $region12
    $region11: #{tpu_custom_call.1} parent=5 // pred_region
      %s215 = ssub.s32 %s13, 1
      // Predicated region
      $region13: #{tpu_custom_call.1} parent=11 // pred_check
        %p216 = pneg %p112
      $region14: #{tpu_custom_call.1} parent=11 // pred_check_branch
        %218 = sbr.rel (%p216) target = $region16
      $region15: #{tpu_custom_call.1} parent=11 // pred_region
        _
      $region16: #{tpu_custom_call.1} parent=11 // pred_fallthru
        _
      // Predicated region
      $region17: #{tpu_custom_call.1} parent=11 // pred_check
        %p219 = pneg %p133
      $region18: #{tpu_custom_call.1} parent=11 // pred_check_branch
        %221 = sbr.rel (%p219) target = $region20
      $region19: #{tpu_custom_call.1} parent=11 // pred_region
        _
      $region20: #{tpu_custom_call.1} parent=11 // pred_fallthru
        _
      // Predicated region
      $region21: #{tpu_custom_call.1} parent=11 // pred_check
        %p222 = pneg %p154
      $region22: #{tpu_custom_call.1} parent=11 // pred_check_branch
        %224 = sbr.rel (%p222) target = $region24
      $region23: #{tpu_custom_call.1} parent=11 // pred_region
        _
      $region24: #{tpu_custom_call.1} parent=11 // pred_fallthru
        _
      // Predicated region
      $region25: #{tpu_custom_call.1} parent=11 // pred_check
        %p225 = pneg %p175
      $region26: #{tpu_custom_call.1} parent=11 // pred_check_branch
        %227 = sbr.rel (%p225) target = $region28
      $region27: #{tpu_custom_call.1} parent=11 // pred_region
        _
      $region28: #{tpu_custom_call.1} parent=11 // pred_fallthru
        _
    $region12: #{tpu_custom_call.1} parent=5 // pred_fallthru
      _
    %p228 = scmp.lt.s32.totalorder %s13, 2
    // Predicated region
    $region29: #{tpu_custom_call.1} parent=5 // pred_check
      %p229 = pneg %p228
    $region30: #{tpu_custom_call.1} parent=5 // pred_check_branch
      %231 = sbr.rel (%p229) target = $region32
    $region31: #{tpu_custom_call.1} parent=5 // pred_region
      // Predicated region
      $region33: #{tpu_custom_call.1} parent=31 // pred_check
        %p232 = pneg %p33
      $region34: #{tpu_custom_call.1} parent=31 // pred_check_branch
        %234 = sbr.rel (%p232) target = $region36
      $region35: #{tpu_custom_call.1} parent=31 // pred_region
        %p235 = scmp.lt.s32.totalorder %s13, 1
        %s236 = scalar_select %p235, %s13, 1
        %s237 = smul.addr %s236, 4
        %s238 = smul.addr %s237, 8
        %s239 = scalar_lea.vmem %s0, %s238
      $region36: #{tpu_custom_call.1} parent=31 // pred_fallthru
        _
      // Predicated region
      $region37: #{tpu_custom_call.1} parent=31 // pred_check
        %p240 = pneg %p59
      $region38: #{tpu_custom_call.1} parent=31 // pred_check_branch
        %242 = sbr.rel (%p240) target = $region40
      $region39: #{tpu_custom_call.1} parent=31 // pred_region
        %p243 = scmp.lt.s32.totalorder %s13, 1
        %s244 = scalar_select %p243, %s13, 1
        %s245 = smul.addr %s244, 4
        %s246 = smul.addr %s245, 8
        %s247 = scalar_lea.vmem %s1, %s246
      $region40: #{tpu_custom_call.1} parent=31 // pred_fallthru
        _
      // Predicated region
      $region41: #{tpu_custom_call.1} parent=31 // pred_check
        %p248 = pneg %p85
      $region42: #{tpu_custom_call.1} parent=31 // pred_check_branch
        %250 = sbr.rel (%p248) target = $region44
      $region43: #{tpu_custom_call.1} parent=31 // pred_region
        %p251 = scmp.lt.s32.totalorder %s13, 1
        %s252 = scalar_select %p251, %s13, 1
        %s253 = smul.addr %s252, 4
        %s254 = smul.addr %s253, 8
        %s255 = scalar_lea.vmem %s2, %s254
      $region44: #{tpu_custom_call.1} parent=31 // pred_fallthru
        _
    $region32: #{tpu_custom_call.1} parent=5 // pred_fallthru
      _
    %p256 = scmp.le.s32.totalorder 1, %s13
    %p257 = scmp.lt.s32.totalorder %s13, 3
    %p258 = pnand %p256, %p257
    %p259 = pneg %p258
    // Predicated region
    $region45: #{tpu_custom_call.1} parent=5 // pred_check
      _
    $region46: #{tpu_custom_call.1} parent=5 // pred_check_branch
      %261 = sbr.rel (%p258) target = $region48
    $region47: #{tpu_custom_call.1} parent=5 // pred_region
      %s262 = ssub.s32 %s13, 1
      %p263 = scmp.lt.s32.totalorder %s18, 1
      %s264 = scalar_select %p263, %s18, 1
      %s265 = smul.addr %s264, 4
      %s266 = smul.addr %s265, 8
      %s267 = scalar_lea.vmem %s0, %s266
      %p268 = pneg %p39
      %p269 = pneg %p36
      %p270 = scmp.lt.s32.totalorder %s18, 1
      %s271 = scalar_select %p270, %s18, 1
      %s272 = smul.addr %s271, 4
      %s273 = smul.addr %s272, 8
      %s274 = scalar_lea.vmem %s1, %s273
      %p275 = pneg %p65
      %p276 = pneg %p62
      %p277 = scmp.lt.s32.totalorder %s18, 1
      %s278 = scalar_select %p277, %s18, 1
      %s279 = smul.addr %s278, 4
      %s280 = smul.addr %s279, 8
      %s281 = scalar_lea.vmem %s2, %s280
      %p282 = pneg %p91
      %p283 = pneg %p88
      %p284 = pneg %p112
      %p285 = pneg %p109
      %p286 = pneg %p133
      %p287 = pneg %p130
      %p288 = pneg %p154
      %p289 = pneg %p151
      %p290 = pneg %p175
      %p291 = pneg %p172
      %p292 = pneg %p201
      %p293 = pneg %p198
      %p294 = scmp.lt.s32.totalorder %s18, 1
      %s295 = scalar_select %p294, %s18, 1
      %s296 = smul.addr %s295, 4
      %s297 = smul.addr %s296, 8
      %s298 = scalar_lea.vmem %s7, %s297
      %p299 = scmp.lt.s32.totalorder %s18, 1
      %s300 = scalar_select %p299, %s18, 1
      %s301 = smul.addr %s300, 4
      %s302 = smul.addr %s301, 8
      %s303 = scalar_lea.vmem %s0, %s302
      %p304 = scmp.lt.s32.totalorder %s18, 1
      %s305 = scalar_select %p304, %s18, 1
      %s306 = smul.addr %s305, 4
      %s307 = smul.addr %s306, 8
      %s308 = scalar_lea.vmem %s1, %s307
      %p309 = scmp.lt.s32.totalorder %s18, 1
      %s310 = scalar_select %p309, %s18, 1
      %s311 = smul.addr %s310, 4
      %s312 = smul.addr %s311, 8
      %s313 = scalar_lea.vmem %s2, %s312
      %p314 = scmp.lt.s32.totalorder %s18, 1
      %s315 = scalar_select %p314, %s18, 1
      %s316 = smul.addr %s315, 4
      %s317 = smul.addr %s316, 8
      %s318 = scalar_lea.vmem %s7, %s317
      %v319 = vld [vmem:[%s3] sm:$0xff]
      %v320 = vld [vmem:[%s3 + $0x8] sm:$0xff]
      %v321 = vld [vmem:[%s3 + $0x10] sm:$0xff]
      %v322 = vld [vmem:[%s3 + $0x18] sm:$0xff]
      %v323 = vld [vmem:[%s303] sm:$0xff]
      %v324 = vld [vmem:[%s303 + $0x8] sm:$0xff]
      %v325 = vld [vmem:[%s303 + $0x10] sm:$0xff]
      %v326 = vld [vmem:[%s303 + $0x18] sm:$0xff]
      %v327 = vld [vmem:[%s4] sm:$0xff]
      %v328 = vld [vmem:[%s4 + $0x8] sm:$0xff]
      %v329 = vld [vmem:[%s4 + $0x10] sm:$0xff]
      %v330 = vld [vmem:[%s4 + $0x18] sm:$0xff]
      %332 = vset.pattern.permute.xlu0 0
      %333 = vperm.xlu0 %332, %v327
      %v334 = vpop.permute.xlu0 %333
      %337 = vset.pattern.permute.xlu0 0
      %338 = vperm.xlu0 %337, %v328
      %v339 = vpop.permute.xlu0 %338
      %342 = vset.pattern.permute.xlu0 0
      %343 = vperm.xlu0 %342, %v329
      %v344 = vpop.permute.xlu0 %343
      %347 = vset.pattern.permute.xlu0 0
      %348 = vperm.xlu0 %347, %v330
      %v349 = vpop.permute.xlu0 %348
      %vm351 = vcmask 261120
      %v353 = vsel %vm351, %v319, 0
      %v356 = vsel %vm351, %v320, 0
      %v359 = vsel %vm351, %v321, 0
      %v362 = vsel %vm351, %v322, 0
      %364 = vmatpush.msra.mxu0 0.0
      %365 = vmatpush.msra.mxu0 0.0
      %366 = vmatpush.msra.mxu0 0.0
      %367 = vmatpush.msra.mxu0 0.0
      %368 = vmatpush.msra.mxu0 0.0
      %369 = vmatpush.msra.mxu0 0.0
      %370 = vmatpush.msra.mxu0 0.0
      %371 = vmatpush.msra.mxu0 0.0
      %372 = vmatpush.msra.mxu0 0.0
      %373 = vmatpush.msra.mxu0 0.0
      %374 = vmatpush.msra.mxu0 0.0
      %375 = vmatpush.msra.mxu0 0.0
      %376 = vmatpush.msra.mxu0 %v326
      %377 = vmatpush.msra.mxu0 %v325
      %378 = vmatpush.msra.mxu0 %v324
      %379 = vmatpush.msra.mxu0 %v323
      %380 = vmatmul.f32.gmra.mxu0 %v353
      %v381 = vpop.f32.mrf.mxu0
      %v382 = vadd.f32 %v334, %v381
      %383 = vmatmul.f32.gmra.mxu0 %v356
      %v384 = vpop.f32.mrf.mxu0
      %v385 = vadd.f32 %v339, %v384
      %386 = vmatmul.f32.gmra.mxu0 %v359
      %v387 = vpop.f32.mrf.mxu0
      %v388 = vadd.f32 %v344, %v387
      %389 = vmatmul.f32.gmra.mxu0 %v362
      %v390 = vpop.f32.mrf.mxu0
      %v391 = vadd.f32 %v349, %v390
      %392 = vdwg.mxu0
      %s393 = scalar_lea.vmem %s3, 32
      %v394 = vld [vmem:[%s393] sm:$0xff]
      %v395 = vld [vmem:[%s393 + $0x8] sm:$0xff]
      %v396 = vld [vmem:[%s393 + $0x10] sm:$0xff]
      %v397 = vld [vmem:[%s393 + $0x18] sm:$0xff]
      %v398 = vld [vmem:[%s308] sm:$0xff]
      %v399 = vld [vmem:[%s308 + $0x8] sm:$0xff]
      %v400 = vld [vmem:[%s308 + $0x10] sm:$0xff]
      %v401 = vld [vmem:[%s308 + $0x18] sm:$0xff]
      %s402 = scalar_lea.vmem %s4, 32
      %v403 = vld [vmem:[%s402] sm:$0xff]
      %v404 = vld [vmem:[%s402 + $0x8] sm:$0xff]
      %v405 = vld [vmem:[%s402 + $0x10] sm:$0xff]
      %v406 = vld [vmem:[%s402 + $0x18] sm:$0xff]
      %408 = vset.pattern.permute.xlu0 0
      %409 = vperm.xlu0 %408, %v403
      %v410 = vpop.permute.xlu0 %409
      %413 = vset.pattern.permute.xlu0 0
      %414 = vperm.xlu0 %413, %v404
      %v415 = vpop.permute.xlu0 %414
      %418 = vset.pattern.permute.xlu0 0
      %419 = vperm.xlu0 %418, %v405
      %v420 = vpop.permute.xlu0 %419
      %423 = vset.pattern.permute.xlu0 0
      %424 = vperm.xlu0 %423, %v406
      %v425 = vpop.permute.xlu0 %424
      %v428 = vsel %vm351, %v394, 0
      %v431 = vsel %vm351, %v395, 0
      %v434 = vsel %vm351, %v396, 0
      %v437 = vsel %vm351, %v397, 0
      %439 = vmatpush.msra.mxu0 0.0
      %440 = vmatpush.msra.mxu0 0.0
      %441 = vmatpush.msra.mxu0 0.0
      %442 = vmatpush.msra.mxu0 0.0
      %443 = vmatpush.msra.mxu0 0.0
      %444 = vmatpush.msra.mxu0 0.0
      %445 = vmatpush.msra.mxu0 0.0
      %446 = vmatpush.msra.mxu0 0.0
      %447 = vmatpush.msra.mxu0 0.0
      %448 = vmatpush.msra.mxu0 0.0
      %449 = vmatpush.msra.mxu0 0.0
      %450 = vmatpush.msra.mxu0 0.0
      %451 = vmatpush.msra.mxu0 %v401
      %452 = vmatpush.msra.mxu0 %v400
      %453 = vmatpush.msra.mxu0 %v399
      %454 = vmatpush.msra.mxu0 %v398
      %455 = vmatmul.f32.gmra.mxu0 %v428
      %v456 = vpop.f32.mrf.mxu0
      %v457 = vadd.f32 %v410, %v456
      %458 = vmatmul.f32.gmra.mxu0 %v431
      %v459 = vpop.f32.mrf.mxu0
      %v460 = vadd.f32 %v415, %v459
      %461 = vmatmul.f32.gmra.mxu0 %v434
      %v462 = vpop.f32.mrf.mxu0
      %v463 = vadd.f32 %v420, %v462
      %464 = vmatmul.f32.gmra.mxu0 %v437
      %v465 = vpop.f32.mrf.mxu0
      %v466 = vadd.f32 %v425, %v465
      %467 = vdwg.mxu0
      %s468 = scalar_lea.vmem %s3, 64
      %v469 = vld [vmem:[%s468] sm:$0xff]
      %v470 = vld [vmem:[%s468 + $0x8] sm:$0xff]
      %v471 = vld [vmem:[%s468 + $0x10] sm:$0xff]
      %v472 = vld [vmem:[%s468 + $0x18] sm:$0xff]
      %v473 = vld [vmem:[%s313] sm:$0xff]
      %v474 = vld [vmem:[%s313 + $0x8] sm:$0xff]
      %v475 = vld [vmem:[%s313 + $0x10] sm:$0xff]
      %v476 = vld [vmem:[%s313 + $0x18] sm:$0xff]
      %s477 = scalar_lea.vmem %s4, 64
      %v478 = vld [vmem:[%s477] sm:$0xff]
      %v479 = vld [vmem:[%s477 + $0x8] sm:$0xff]
      %v480 = vld [vmem:[%s477 + $0x10] sm:$0xff]
      %v481 = vld [vmem:[%s477 + $0x18] sm:$0xff]
      %483 = vset.pattern.permute.xlu0 0
      %484 = vperm.xlu0 %483, %v478
      %v485 = vpop.permute.xlu0 %484
      %488 = vset.pattern.permute.xlu0 0
      %489 = vperm.xlu0 %488, %v479
      %v490 = vpop.permute.xlu0 %489
      %493 = vset.pattern.permute.xlu0 0
      %494 = vperm.xlu0 %493, %v480
      %v495 = vpop.permute.xlu0 %494
      %498 = vset.pattern.permute.xlu0 0
      %499 = vperm.xlu0 %498, %v481
      %v500 = vpop.permute.xlu0 %499
      %v503 = vsel %vm351, %v469, 0
      %v506 = vsel %vm351, %v470, 0
      %v509 = vsel %vm351, %v471, 0
      %v512 = vsel %vm351, %v472, 0
      %514 = vmatpush.msra.mxu0 0.0
      %515 = vmatpush.msra.mxu0 0.0
      %516 = vmatpush.msra.mxu0 0.0
      %517 = vmatpush.msra.mxu0 0.0
      %518 = vmatpush.msra.mxu0 0.0
      %519 = vmatpush.msra.mxu0 0.0
      %520 = vmatpush.msra.mxu0 0.0
      %521 = vmatpush.msra.mxu0 0.0
      %522 = vmatpush.msra.mxu0 0.0
      %523 = vmatpush.msra.mxu0 0.0
      %524 = vmatpush.msra.mxu0 0.0
      %525 = vmatpush.msra.mxu0 0.0
      %526 = vmatpush.msra.mxu0 %v476
      %527 = vmatpush.msra.mxu0 %v475
      %528 = vmatpush.msra.mxu0 %v474
      %529 = vmatpush.msra.mxu0 %v473
      %530 = vmatmul.f32.gmra.mxu0 %v503
      %v531 = vpop.f32.mrf.mxu0
      %v532 = vadd.f32 %v485, %v531
      %533 = vmatmul.f32.gmra.mxu0 %v506
      %v534 = vpop.f32.mrf.mxu0
      %v535 = vadd.f32 %v490, %v534
      %536 = vmatmul.f32.gmra.mxu0 %v509
      %v537 = vpop.f32.mrf.mxu0
      %v538 = vadd.f32 %v495, %v537
      %539 = vmatmul.f32.gmra.mxu0 %v512
      %v540 = vpop.f32.mrf.mxu0
      %v541 = vadd.f32 %v500, %v540
      %542 = vdwg.mxu0
      %543 = vxpose.xlu0.b32.start [1/16] %v457, 128
      %544 = vxpose.xlu0.b32.cont [2/16] 0.0, 128
      %545 = vxpose.xlu0.b32.cont [3/16] 0.0, 128
      %546 = vxpose.xlu0.b32.cont [4/16] 0.0, 128
      %547 = vxpose.xlu0.b32.cont [5/16] 0.0, 128
      %548 = vxpose.xlu0.b32.cont [6/16] 0.0, 128
      %549 = vxpose.xlu0.b32.cont [7/16] 0.0, 128
      %550 = vxpose.xlu0.b32.cont [8/16] 0.0, 128
      %551 = vxpose.xlu0.b32.cont [9/16] 0.0, 128
      %552 = vxpose.xlu0.b32.cont [10/16] 0.0, 128
      %553 = vxpose.xlu0.b32.cont [11/16] 0.0, 128
      %554 = vxpose.xlu0.b32.cont [12/16] 0.0, 128
      %555 = vxpose.xlu0.b32.cont [13/16] 0.0, 128
      %556 = vxpose.xlu0.b32.cont [14/16] 0.0, 128
      %557 = vxpose.xlu0.b32.cont [15/16] 0.0, 128
      %558 = vxpose.xlu0.b32.end [16/16] 0.0, 128
      %v559 = vpop.trf.xlu0
      %v560 = vpop.trf.xlu0
      %v561 = vpop.trf.xlu0
      %v562 = vpop.trf.xlu0
      %v563 = vpop.trf.xlu0
      %v564 = vpop.trf.xlu0
      %v565 = vpop.trf.xlu0
      %v566 = vpop.trf.xlu0
      %v567 = vpop.trf.xlu0
      %v568 = vpop.trf.xlu0
      %v569 = vpop.trf.xlu0
      %v570 = vpop.trf.xlu0
      %v571 = vpop.trf.xlu0
      %v572 = vpop.trf.xlu0
      %v573 = vpop.trf.xlu0
      %v574 = vpop.trf.xlu0
      %vm575 = vcmask 64512
      %v577 = vsel %vm575, %v559, 0
      %v580 = vsel %vm575, %v560, 0
      %582 = vmatpush.msra.mxu0 0.0
      %583 = vmatpush.msra.mxu0 0.0
      %584 = vmatpush.msra.mxu0 0.0
      %585 = vmatpush.msra.mxu0 0.0
      %586 = vmatpush.msra.mxu0 0.0
      %587 = vmatpush.msra.mxu0 0.0
      %588 = vmatpush.msra.mxu0 0.0
      %589 = vmatpush.msra.mxu0 0.0
      %590 = vmatpush.msra.mxu0 0.0
      %591 = vmatpush.msra.mxu0 0.0
      %592 = vmatpush.msra.mxu0 0.0
      %593 = vmatpush.msra.mxu0 0.0
      %594 = vmatpush.msra.mxu0 0.0
      %595 = vmatpush.msra.mxu0 0.0
      %596 = vmatpush.msra.mxu0 0.0
      %597 = vmatpush.msra.mxu0 %v382
      %598 = vmatmul.f32.gmra.mxu0 %v577
      %v599 = vpop.f32.mrf.mxu0
      %v600 = vadd.f32 0.0, %v599
      %601 = vmatmul.f32.gmra.mxu0 %v580
      %v602 = vpop.f32.mrf.mxu0
      %v603 = vadd.f32 0.0, %v602
      %604 = vdwg.mxu0
      %vm605 = vcmask 130048
      %v606 = vsel %vm605, %v600, -inf
      %v607 = vsel %vm605, %v603, -inf
      %v608 = vmax.f32 %v606, %v607
      %v609 = vrot.slane %v608, 4
      %v610 = vmax.f32 %v608, %v609
      %v611 = vrot.slane %v610, 2
      %v612 = vmax.f32 %v610, %v611
      %v613 = vrot.slane %v612, 1
      %v614 = vmax.f32 %v612, %v613
      %v615 = vsub.f32 %v600, %v614
      %v616 = vsub.f32 %v603, %v614
      %v617 = vmul.f32 %v615, 1.442695
      %v618 = vpow.pop %v617
      %v619 = vmul.f32 %v616, 1.442695
      %v620 = vpow.pop %v619
      %v621 = vsel %vm605, %v618, 0.0
      %v622 = vsel %vm605, %v620, 0.0
      %v623 = vadd.f32 %v621, %v622
      %v624 = vrot.slane %v623, 4
      %v625 = vadd.f32 %v623, %v624
      %v626 = vrot.slane %v625, 2
      %v627 = vadd.f32 %v625, %v626
      %v628 = vrot.slane %v627, 1
      %v629 = vadd.f32 %v627, %v628
      %v631 = vsel %vm605, %v532, 0
      %633 = vmatpush.msra.mxu0 0.0
      %634 = vmatpush.msra.mxu0 0.0
      %635 = vmatpush.msra.mxu0 0.0
      %636 = vmatpush.msra.mxu0 0.0
      %637 = vmatpush.msra.mxu0 0.0
      %638 = vmatpush.msra.mxu0 0.0
      %639 = vmatpush.msra.mxu0 0.0
      %640 = vmatpush.msra.mxu0 0.0
      %641 = vmatpush.msra.mxu0 0.0
      %642 = vmatpush.msra.mxu0 0.0
      %643 = vmatpush.msra.mxu0 0.0
      %644 = vmatpush.msra.mxu0 0.0
      %645 = vmatpush.msra.mxu0 0.0
      %646 = vmatpush.msra.mxu0 0.0
      %647 = vmatpush.msra.mxu0 %v620
      %648 = vmatpush.msra.mxu0 %v618
      %649 = vmatmul.f32.gmra.mxu0 %v631
      %v650 = vpop.f32.mrf.mxu0
      %v651 = vadd.f32 0.0, %v650
      %652 = vdwg.mxu0
      %v653 = vrcp.pop %v629
      %v654 = vmul.f32 %v629, %v653
      %v655 = vsub.f32 1.0, %v654
      %v656 = vmul.f32 %v653, %v655
      %v657 = vadd.f32 %v653, %v656
      %vm658 = vweird.f32 %v629
      %vm659 = vweird.f32 %v653
      %vm660 = vmor %vm658, %vm659
      %v661 = vsel %vm660, %v653, %v657
      %v662 = vand.u32 2147483647, %v629
      %vm663 = vcmp.eq.f32.partialorder %v662, 8.507059e+37
      %v664 = vand.u32 %v629, 2147483648
      %v665 = vor.u32 1.1754944e-38, %v664
      %v666 = vsel %vm663, %v665, %v661
      %v667 = vmul.f32 %v651, %v666
      %668 = vst.msk [vmem:[#allocation2] sm:$0xff] %vm605, %v667
      %669 = vxpose.xlu0.b32.start [1/16] %v460, 128
      %670 = vxpose.xlu0.b32.cont [2/16] 0.0, 128
      %671 = vxpose.xlu0.b32.cont [3/16] 0.0, 128
      %672 = vxpose.xlu0.b32.cont [4/16] 0.0, 128
      %673 = vxpose.xlu0.b32.cont [5/16] 0.0, 128
      %674 = vxpose.xlu0.b32.cont [6/16] 0.0, 128
      %675 = vxpose.xlu0.b32.cont [7/16] 0.0, 128
      %676 = vxpose.xlu0.b32.cont [8/16] 0.0, 128
      %677 = vxpose.xlu0.b32.cont [9/16] 0.0, 128
      %678 = vxpose.xlu0.b32.cont [10/16] 0.0, 128
      %679 = vxpose.xlu0.b32.cont [11/16] 0.0, 128
      %680 = vxpose.xlu0.b32.cont [12/16] 0.0, 128
      %681 = vxpose.xlu0.b32.cont [13/16] 0.0, 128
      %682 = vxpose.xlu0.b32.cont [14/16] 0.0, 128
      %683 = vxpose.xlu0.b32.cont [15/16] 0.0, 128
      %684 = vxpose.xlu0.b32.end [16/16] 0.0, 128
      %v685 = vpop.trf.xlu0
      %v686 = vpop.trf.xlu0
      %v687 = vpop.trf.xlu0
      %v688 = vpop.trf.xlu0
      %v689 = vpop.trf.xlu0
      %v690 = vpop.trf.xlu0
      %v691 = vpop.trf.xlu0
      %v692 = vpop.trf.xlu0
      %v693 = vpop.trf.xlu0
      %v694 = vpop.trf.xlu0
      %v695 = vpop.trf.xlu0
      %v696 = vpop.trf.xlu0
      %v697 = vpop.trf.xlu0
      %v698 = vpop.trf.xlu0
      %v699 = vpop.trf.xlu0
      %v700 = vpop.trf.xlu0
      %v702 = vsel %vm575, %v685, 0
      %v705 = vsel %vm575, %v686, 0
      %707 = vmatpush.msra.mxu0 0.0
      %708 = vmatpush.msra.mxu0 0.0
      %709 = vmatpush.msra.mxu0 0.0
      %710 = vmatpush.msra.mxu0 0.0
      %711 = vmatpush.msra.mxu0 0.0
      %712 = vmatpush.msra.mxu0 0.0
      %713 = vmatpush.msra.mxu0 0.0
      %714 = vmatpush.msra.mxu0 0.0
      %715 = vmatpush.msra.mxu0 0.0
      %716 = vmatpush.msra.mxu0 0.0
      %717 = vmatpush.msra.mxu0 0.0
      %718 = vmatpush.msra.mxu0 0.0
      %719 = vmatpush.msra.mxu0 0.0
      %720 = vmatpush.msra.mxu0 0.0
      %721 = vmatpush.msra.mxu0 0.0
      %722 = vmatpush.msra.mxu0 %v385
      %723 = vmatmul.f32.gmra.mxu0 %v702
      %v724 = vpop.f32.mrf.mxu0
      %v725 = vadd.f32 0.0, %v724
      %726 = vmatmul.f32.gmra.mxu0 %v705
      %v727 = vpop.f32.mrf.mxu0
      %v728 = vadd.f32 0.0, %v727
      %729 = vdwg.mxu0
      %v730 = vsel %vm605, %v725, -inf
      %v731 = vsel %vm605, %v728, -inf
      %v732 = vmax.f32 %v730, %v731
      %v733 = vrot.slane %v732, 4
      %v734 = vmax.f32 %v732, %v733
      %v735 = vrot.slane %v734, 2
      %v736 = vmax.f32 %v734, %v735
      %v737 = vrot.slane %v736, 1
      %v738 = vmax.f32 %v736, %v737
      %v739 = vsub.f32 %v725, %v738
      %v740 = vsub.f32 %v728, %v738
      %v741 = vmul.f32 %v739, 1.442695
      %v742 = vpow.pop %v741
      %v743 = vmul.f32 %v740, 1.442695
      %v744 = vpow.pop %v743
      %v745 = vsel %vm605, %v742, 0.0
      %v746 = vsel %vm605, %v744, 0.0
      %v747 = vadd.f32 %v745, %v746
      %v748 = vrot.slane %v747, 4
      %v749 = vadd.f32 %v747, %v748
      %v750 = vrot.slane %v749, 2
      %v751 = vadd.f32 %v749, %v750
      %v752 = vrot.slane %v751, 1
      %v753 = vadd.f32 %v751, %v752
      %v755 = vsel %vm605, %v535, 0
      %757 = vmatpush.msra.mxu0 0.0
      %758 = vmatpush.msra.mxu0 0.0
      %759 = vmatpush.msra.mxu0 0.0
      %760 = vmatpush.msra.mxu0 0.0
      %761 = vmatpush.msra.mxu0 0.0
      %762 = vmatpush.msra.mxu0 0.0
      %763 = vmatpush.msra.mxu0 0.0
      %764 = vmatpush.msra.mxu0 0.0
      %765 = vmatpush.msra.mxu0 0.0
      %766 = vmatpush.msra.mxu0 0.0
      %767 = vmatpush.msra.mxu0 0.0
      %768 = vmatpush.msra.mxu0 0.0
      %769 = vmatpush.msra.mxu0 0.0
      %770 = vmatpush.msra.mxu0 0.0
      %771 = vmatpush.msra.mxu0 %v744
      %772 = vmatpush.msra.mxu0 %v742
      %773 = vmatmul.f32.gmra.mxu0 %v755
      %v774 = vpop.f32.mrf.mxu0
      %v775 = vadd.f32 0.0, %v774
      %776 = vdwg.mxu0
      %v777 = vrcp.pop %v753
      %v778 = vmul.f32 %v753, %v777
      %v779 = vsub.f32 1.0, %v778
      %v780 = vmul.f32 %v777, %v779
      %v781 = vadd.f32 %v777, %v780
      %vm782 = vweird.f32 %v753
      %vm783 = vweird.f32 %v777
      %vm784 = vmor %vm782, %vm783
      %v785 = vsel %vm784, %v777, %v781
      %v786 = vand.u32 2147483647, %v753
      %vm787 = vcmp.eq.f32.partialorder %v786, 8.507059e+37
      %v788 = vand.u32 %v753, 2147483648
      %v789 = vor.u32 1.1754944e-38, %v788
      %v790 = vsel %vm787, %v789, %v785
      %v791 = vmul.f32 %v775, %v790
      %792 = vst.msk [vmem:[#allocation2 + $0x8] sm:$0xff] %vm605, %v791
      %793 = vxpose.xlu0.b32.start [1/16] %v463, 128
      %794 = vxpose.xlu0.b32.cont [2/16] 0.0, 128
      %795 = vxpose.xlu0.b32.cont [3/16] 0.0, 128
      %796 = vxpose.xlu0.b32.cont [4/16] 0.0, 128
      %797 = vxpose.xlu0.b32.cont [5/16] 0.0, 128
      %798 = vxpose.xlu0.b32.cont [6/16] 0.0, 128
      %799 = vxpose.xlu0.b32.cont [7/16] 0.0, 128
      %800 = vxpose.xlu0.b32.cont [8/16] 0.0, 128
      %801 = vxpose.xlu0.b32.cont [9/16] 0.0, 128
      %802 = vxpose.xlu0.b32.cont [10/16] 0.0, 128
      %803 = vxpose.xlu0.b32.cont [11/16] 0.0, 128
      %804 = vxpose.xlu0.b32.cont [12/16] 0.0, 128
      %805 = vxpose.xlu0.b32.cont [13/16] 0.0, 128
      %806 = vxpose.xlu0.b32.cont [14/16] 0.0, 128
      %807 = vxpose.xlu0.b32.cont [15/16] 0.0, 128
      %808 = vxpose.xlu0.b32.end [16/16] 0.0, 128
      %v809 = vpop.trf.xlu0
      %v810 = vpop.trf.xlu0
      %v811 = vpop.trf.xlu0
      %v812 = vpop.trf.xlu0
      %v813 = vpop.trf.xlu0
      %v814 = vpop.trf.xlu0
      %v815 = vpop.trf.xlu0
      %v816 = vpop.trf.xlu0
      %v817 = vpop.trf.xlu0
      %v818 = vpop.trf.xlu0
      %v819 = vpop.trf.xlu0
      %v820 = vpop.trf.xlu0
      %v821 = vpop.trf.xlu0
      %v822 = vpop.trf.xlu0
      %v823 = vpop.trf.xlu0
      %v824 = vpop.trf.xlu0
      %v826 = vsel %vm575, %v809, 0
      %v829 = vsel %vm575, %v810, 0
      %831 = vmatpush.msra.mxu0 0.0
      %832 = vmatpush.msra.mxu0 0.0
      %833 = vmatpush.msra.mxu0 0.0
      %834 = vmatpush.msra.mxu0 0.0
      %835 = vmatpush.msra.mxu0 0.0
      %836 = vmatpush.msra.mxu0 0.0
      %837 = vmatpush.msra.mxu0 0.0
      %838 = vmatpush.msra.mxu0 0.0
      %839 = vmatpush.msra.mxu0 0.0
      %840 = vmatpush.msra.mxu0 0.0
      %841 = vmatpush.msra.mxu0 0.0
      %842 = vmatpush.msra.mxu0 0.0
      %843 = vmatpush.msra.mxu0 0.0
      %844 = vmatpush.msra.mxu0 0.0
      %845 = vmatpush.msra.mxu0 0.0
      %846 = vmatpush.msra.mxu0 %v388
      %847 = vmatmul.f32.gmra.mxu0 %v826
      %v848 = vpop.f32.mrf.mxu0
      %v849 = vadd.f32 0.0, %v848
      %850 = vmatmul.f32.gmra.mxu0 %v829
      %v851 = vpop.f32.mrf.mxu0
      %v852 = vadd.f32 0.0, %v851
      %853 = vdwg.mxu0
      %v854 = vsel %vm605, %v849, -inf
      %v855 = vsel %vm605, %v852, -inf
      %v856 = vmax.f32 %v854, %v855
      %v857 = vrot.slane %v856, 4
      %v858 = vmax.f32 %v856, %v857
      %v859 = vrot.slane %v858, 2
      %v860 = vmax.f32 %v858, %v859
      %v861 = vrot.slane %v860, 1
      %v862 = vmax.f32 %v860, %v861
      %v863 = vsub.f32 %v849, %v862
      %v864 = vsub.f32 %v852, %v862
      %v865 = vmul.f32 %v863, 1.442695
      %v866 = vpow.pop %v865
      %v867 = vmul.f32 %v864, 1.442695
      %v868 = vpow.pop %v867
      %v869 = vsel %vm605, %v866, 0.0
      %v870 = vsel %vm605, %v868, 0.0
      %v871 = vadd.f32 %v869, %v870
      %v872 = vrot.slane %v871, 4
      %v873 = vadd.f32 %v871, %v872
      %v874 = vrot.slane %v873, 2
      %v875 = vadd.f32 %v873, %v874
      %v876 = vrot.slane %v875, 1
      %v877 = vadd.f32 %v875, %v876
      %v879 = vsel %vm605, %v538, 0
      %881 = vmatpush.msra.mxu0 0.0
      %882 = vmatpush.msra.mxu0 0.0
      %883 = vmatpush.msra.mxu0 0.0
      %884 = vmatpush.msra.mxu0 0.0
      %885 = vmatpush.msra.mxu0 0.0
      %886 = vmatpush.msra.mxu0 0.0
      %887 = vmatpush.msra.mxu0 0.0
      %888 = vmatpush.msra.mxu0 0.0
      %889 = vmatpush.msra.mxu0 0.0
      %890 = vmatpush.msra.mxu0 0.0
      %891 = vmatpush.msra.mxu0 0.0
      %892 = vmatpush.msra.mxu0 0.0
      %893 = vmatpush.msra.mxu0 0.0
      %894 = vmatpush.msra.mxu0 0.0
      %895 = vmatpush.msra.mxu0 %v868
      %896 = vmatpush.msra.mxu0 %v866
      %897 = vmatmul.f32.gmra.mxu0 %v879
      %v898 = vpop.f32.mrf.mxu0
      %v899 = vadd.f32 0.0, %v898
      %900 = vdwg.mxu0
      %v901 = vrcp.pop %v877
      %v902 = vmul.f32 %v877, %v901
      %v903 = vsub.f32 1.0, %v902
      %v904 = vmul.f32 %v901, %v903
      %v905 = vadd.f32 %v901, %v904
      %vm906 = vweird.f32 %v877
      %vm907 = vweird.f32 %v901
      %vm908 = vmor %vm906, %vm907
      %v909 = vsel %vm908, %v901, %v905
      %v910 = vand.u32 2147483647, %v877
      %vm911 = vcmp.eq.f32.partialorder %v910, 8.507059e+37
      %v912 = vand.u32 %v877, 2147483648
      %v913 = vor.u32 1.1754944e-38, %v912
      %v914 = vsel %vm911, %v913, %v909
      %v915 = vmul.f32 %v899, %v914
      %916 = vst.msk [vmem:[#allocation2 + $0x10] sm:$0xff] %vm605, %v915
      %917 = vxpose.xlu0.b32.start [1/16] %v466, 128
      %918 = vxpose.xlu0.b32.cont [2/16] 0.0, 128
      %919 = vxpose.xlu0.b32.cont [3/16] 0.0, 128
      %920 = vxpose.xlu0.b32.cont [4/16] 0.0, 128
      %921 = vxpose.xlu0.b32.cont [5/16] 0.0, 128
      %922 = vxpose.xlu0.b32.cont [6/16] 0.0, 128
      %923 = vxpose.xlu0.b32.cont [7/16] 0.0, 128
      %924 = vxpose.xlu0.b32.cont [8/16] 0.0, 128
      %925 = vxpose.xlu0.b32.cont [9/16] 0.0, 128
      %926 = vxpose.xlu0.b32.cont [10/16] 0.0, 128
      %927 = vxpose.xlu0.b32.cont [11/16] 0.0, 128
      %928 = vxpose.xlu0.b32.cont [12/16] 0.0, 128
      %929 = vxpose.xlu0.b32.cont [13/16] 0.0, 128
      %930 = vxpose.xlu0.b32.cont [14/16] 0.0, 128
      %931 = vxpose.xlu0.b32.cont [15/16] 0.0, 128
      %932 = vxpose.xlu0.b32.end [16/16] 0.0, 128
      %v933 = vpop.trf.xlu0
      %v934 = vpop.trf.xlu0
      %v935 = vpop.trf.xlu0
      %v936 = vpop.trf.xlu0
      %v937 = vpop.trf.xlu0
      %v938 = vpop.trf.xlu0
      %v939 = vpop.trf.xlu0
      %v940 = vpop.trf.xlu0
      %v941 = vpop.trf.xlu0
      %v942 = vpop.trf.xlu0
      %v943 = vpop.trf.xlu0
      %v944 = vpop.trf.xlu0
      %v945 = vpop.trf.xlu0
      %v946 = vpop.trf.xlu0
      %v947 = vpop.trf.xlu0
      %v948 = vpop.trf.xlu0
      %v950 = vsel %vm575, %v933, 0
      %v953 = vsel %vm575, %v934, 0
      %955 = vmatpush.msra.mxu0 0.0
      %956 = vmatpush.msra.mxu0 0.0
      %957 = vmatpush.msra.mxu0 0.0
      %958 = vmatpush.msra.mxu0 0.0
      %959 = vmatpush.msra.mxu0 0.0
      %960 = vmatpush.msra.mxu0 0.0
      %961 = vmatpush.msra.mxu0 0.0
      %962 = vmatpush.msra.mxu0 0.0
      %963 = vmatpush.msra.mxu0 0.0
      %964 = vmatpush.msra.mxu0 0.0
      %965 = vmatpush.msra.mxu0 0.0
      %966 = vmatpush.msra.mxu0 0.0
      %967 = vmatpush.msra.mxu0 0.0
      %968 = vmatpush.msra.mxu0 0.0
      %969 = vmatpush.msra.mxu0 0.0
      %970 = vmatpush.msra.mxu0 %v391
      %971 = vmatmul.f32.gmra.mxu0 %v950
      %v972 = vpop.f32.mrf.mxu0
      %v973 = vadd.f32 0.0, %v972
      %974 = vmatmul.f32.gmra.mxu0 %v953
      %v975 = vpop.f32.mrf.mxu0
      %v976 = vadd.f32 0.0, %v975
      %977 = vdwg.mxu0
      %v978 = vsel %vm605, %v973, -inf
      %v979 = vsel %vm605, %v976, -inf
      %v980 = vmax.f32 %v978, %v979
      %v981 = vrot.slane %v980, 4
      %v982 = vmax.f32 %v980, %v981
      %v983 = vrot.slane %v982, 2
      %v984 = vmax.f32 %v982, %v983
      %v985 = vrot.slane %v984, 1
      %v986 = vmax.f32 %v984, %v985
      %v987 = vsub.f32 %v973, %v986
      %v988 = vsub.f32 %v976, %v986
      %v989 = vmul.f32 %v987, 1.442695
      %v990 = vpow.pop %v989
      %v991 = vmul.f32 %v988, 1.442695
      %v992 = vpow.pop %v991
      %v993 = vsel %vm605, %v990, 0.0
      %v994 = vsel %vm605, %v992, 0.0
      %v995 = vadd.f32 %v993, %v994
      %v996 = vrot.slane %v995, 4
      %v997 = vadd.f32 %v995, %v996
      %v998 = vrot.slane %v997, 2
      %v999 = vadd.f32 %v997, %v998
      %v1000 = vrot.slane %v999, 1
      %v1001 = vadd.f32 %v999, %v1000
      %v1003 = vsel %vm605, %v541, 0
      %1005 = vmatpush.msra.mxu0 0.0
      %1006 = vmatpush.msra.mxu0 0.0
      %1007 = vmatpush.msra.mxu0 0.0
      %1008 = vmatpush.msra.mxu0 0.0
      %1009 = vmatpush.msra.mxu0 0.0
      %1010 = vmatpush.msra.mxu0 0.0
      %1011 = vmatpush.msra.mxu0 0.0
      %1012 = vmatpush.msra.mxu0 0.0
      %1013 = vmatpush.msra.mxu0 0.0
      %1014 = vmatpush.msra.mxu0 0.0
      %1015 = vmatpush.msra.mxu0 0.0
      %1016 = vmatpush.msra.mxu0 0.0
      %1017 = vmatpush.msra.mxu0 0.0
      %1018 = vmatpush.msra.mxu0 0.0
      %1019 = vmatpush.msra.mxu0 %v992
      %1020 = vmatpush.msra.mxu0 %v990
      %1021 = vmatmul.f32.gmra.mxu0 %v1003
      %v1022 = vpop.f32.mrf.mxu0
      %v1023 = vadd.f32 0.0, %v1022
      %1024 = vdwg.mxu0
      %v1025 = vrcp.pop %v1001
      %v1026 = vmul.f32 %v1001, %v1025
      %v1027 = vsub.f32 1.0, %v1026
      %v1028 = vmul.f32 %v1025, %v1027
      %v1029 = vadd.f32 %v1025, %v1028
      %vm1030 = vweird.f32 %v1001
      %vm1031 = vweird.f32 %v1025
      %vm1032 = vmor %vm1030, %vm1031
      %v1033 = vsel %vm1032, %v1025, %v1029
      %v1034 = vand.u32 2147483647, %v1001
      %vm1035 = vcmp.eq.f32.partialorder %v1034, 8.507059e+37
      %v1036 = vand.u32 %v1001, 2147483648
      %v1037 = vor.u32 1.1754944e-38, %v1036
      %v1038 = vsel %vm1035, %v1037, %v1033
      %v1039 = vmul.f32 %v1023, %v1038
      %1040 = vst.msk [vmem:[#allocation2 + $0x18] sm:$0xff] %vm605, %v1039
      %v1041 = vld [vmem:[%s5] sm:$0xff]
      %v1042 = vld [vmem:[%s5 + $0x8] sm:$0xff]
      %v1043 = vld [vmem:[%s5 + $0x10] sm:$0xff]
      %v1044 = vld [vmem:[%s5 + $0x18] sm:$0xff]
      %v1045 = vld [vmem:[#allocation2] sm:$0xff]
      %v1046 = vld [vmem:[#allocation2 + $0x8] sm:$0xff]
      %v1047 = vld [vmem:[#allocation2 + $0x10] sm:$0xff]
      %v1048 = vld [vmem:[#allocation2 + $0x18] sm:$0xff]
      %v1049 = vld [vmem:[%s6] sm:$0xff]
      %v1050 = vld [vmem:[%s6 + $0x8] sm:$0xff]
      %v1051 = vld [vmem:[%s6 + $0x10] sm:$0xff]
      %v1052 = vld [vmem:[%s6 + $0x18] sm:$0xff]
      %1054 = vset.pattern.permute.xlu0 0
      %1055 = vperm.xlu0 %1054, %v1049
      %v1056 = vpop.permute.xlu0 %1055
      %1059 = vset.pattern.permute.xlu0 0
      %1060 = vperm.xlu0 %1059, %v1050
      %v1061 = vpop.permute.xlu0 %1060
      %1064 = vset.pattern.permute.xlu0 0
      %1065 = vperm.xlu0 %1064, %v1051
      %v1066 = vpop.permute.xlu0 %1065
      %1069 = vset.pattern.permute.xlu0 0
      %1070 = vperm.xlu0 %1069, %v1052
      %v1071 = vpop.permute.xlu0 %1070
      %v1074 = vsel %vm351, %v1041, 0
      %v1077 = vsel %vm351, %v1042, 0
      %v1080 = vsel %vm351, %v1043, 0
      %v1083 = vsel %vm351, %v1044, 0
      %1085 = vmatpush.msra.mxu0 0.0
      %1086 = vmatpush.msra.mxu0 0.0
      %1087 = vmatpush.msra.mxu0 0.0
      %1088 = vmatpush.msra.mxu0 0.0
      %1089 = vmatpush.msra.mxu0 0.0
      %1090 = vmatpush.msra.mxu0 0.0
      %1091 = vmatpush.msra.mxu0 0.0
      %1092 = vmatpush.msra.mxu0 0.0
      %1093 = vmatpush.msra.mxu0 0.0
      %1094 = vmatpush.msra.mxu0 0.0
      %1095 = vmatpush.msra.mxu0 0.0
      %1096 = vmatpush.msra.mxu0 0.0
      %1097 = vmatpush.msra.mxu0 %v1048
      %1098 = vmatpush.msra.mxu0 %v1047
      %1099 = vmatpush.msra.mxu0 %v1046
      %1100 = vmatpush.msra.mxu0 %v1045
      %1101 = vmatmul.f32.gmra.mxu0 %v1074
      %v1102 = vpop.f32.mrf.mxu0
      %v1103 = vadd.f32 %v1056, %v1102
      %1104 = vmatmul.f32.gmra.mxu0 %v1077
      %v1105 = vpop.f32.mrf.mxu0
      %v1106 = vadd.f32 %v1061, %v1105
      %1107 = vmatmul.f32.gmra.mxu0 %v1080
      %v1108 = vpop.f32.mrf.mxu0
      %v1109 = vadd.f32 %v1066, %v1108
      %1110 = vmatmul.f32.gmra.mxu0 %v1083
      %v1111 = vpop.f32.mrf.mxu0
      %v1112 = vadd.f32 %v1071, %v1111
      %1113 = vdwg.mxu0
      %1114 = vst.msk [vmem:[%s318] sm:$0xff] %vm605, %v1103
      %1115 = vst.msk [vmem:[%s318 + $0x8] sm:$0xff] %vm605, %v1106
      %1116 = vst.msk [vmem:[%s318 + $0x10] sm:$0xff] %vm605, %v1109
      %1117 = vst.msk [vmem:[%s318 + $0x18] sm:$0xff] %vm605, %v1112
      %p1118 = scmp.lt.s32.totalorder %s18, 1
      %s1119 = scalar_select %p1118, %s18, 1
      %s1120 = smul.addr %s1119, 4
      %s1121 = smul.addr %s1120, 8
      %s1122 = scalar_lea.vmem %s7, %s1121
      // Predicated region
      $region49: #{tpu_custom_call.1} parent=47 // pred_check
        %p1123 = pneg %p198
      $region50: #{tpu_custom_call.1} parent=47 // pred_check_branch
        %1125 = sbr.rel (%p1123) target = $region52
      $region51: #{tpu_custom_call.1} parent=47 // pred_region
        _
      $region52: #{tpu_custom_call.1} parent=47 // pred_fallthru
        _
    $region48: #{tpu_custom_call.1} parent=5 // pred_fallthru
      _
    %p1126 = scmp.le.s32.totalorder 2, %s13
    // Predicated region
    $region53: #{tpu_custom_call.1} parent=5 // pred_check
      %p1127 = pneg %p1126
    $region54: #{tpu_custom_call.1} parent=5 // pred_check_branch
      %1129 = sbr.rel (%p1127) target = $region56
    $region55: #{tpu_custom_call.1} parent=5 // pred_region
      %s1130 = ssub.s32 %s13, 2
      // Predicated region
      $region57: #{tpu_custom_call.1} parent=55 // pred_check
        %p1131 = pneg %p204
      $region58: #{tpu_custom_call.1} parent=55 // pred_check_branch
        %1133 = sbr.rel (%p1131) target = $region60
      $region59: #{tpu_custom_call.1} parent=55 // pred_region
        %p1134 = scmp.lt.s32.totalorder %s19, 1
        %s1135 = scalar_select %p1134, %s19, 1
        %s1136 = smul.addr %s1135, 4
        %s1137 = smul.addr %s1136, 8
        %s1138 = scalar_lea.vmem %s7, %s1137
      $region60: #{tpu_custom_call.1} parent=55 // pred_fallthru
        _
    $region56: #{tpu_custom_call.1} parent=5 // pred_fallthru
      _
  $region6: #{tpu_custom_call.1} parent=0 // loop_footer
    %s17 = sadd.s32 1, %s13
  $region7: #{tpu_custom_call.1} parent=0 // loop_footer_branch
    %12 = sbr.rel target = $region3
  $region8: #{tpu_custom_call.1} parent=0 // loop_exit
    _

</llo_original>
